<compile_context>
chip_gen: v7x
topology: tpu7x:2x2x1
jax: 0.10.0
libtpu: 0.0.40
codegen_flags: <defaults>
</compile_context>

<pallas_src>
import functools

import jax
import jax.numpy as jnp
from jax import lax
from jax.experimental import pallas as pl
from jax.experimental.pallas import tpu as pltpu

_NEG_SLOPE = 0.05                      # activation('lrelu') in the reference module


# ----------------------------------------------------------------------------
# generation-aware VMEM budget / tile target
# ----------------------------------------------------------------------------
def _tpu_vmem_capacity_bytes():
    try:
        info = pltpu.get_tpu_info()
        return int(getattr(info, "vmem_capacity_bytes", 128 * 1024 * 1024))
    except Exception:
        return 128 * 1024 * 1024


_VMEM_CAP = _tpu_vmem_capacity_bytes()
# v5e/v6e (128 MiB phys) -> ~96 MiB scoped limit; v7x (64 MiB phys) -> ~48 MiB.
_VMEM_LIMIT = min(int(_VMEM_CAP * 0.75), 96 * 1024 * 1024)
# K2 double-buffers x-in and out (~4x tile) plus small sa/ca buffers; keep headroom.
_TILE_TARGET = min(8 * 1024 * 1024, max(2 * 1024 * 1024, _VMEM_LIMIT // 12))


def _choose_spatial_tile(hw, c, itemsize):
    """Spatial (lane) tile width: a multiple of 128 with C*THW*itemsize ~ _TILE_TARGET.

    Prefers an exact divisor of hw (no ragged tail); otherwise the last grid tile is
    ragged and K1 lane-masks it.
    """
    if hw <= 128:
        return hw
    cap = max(128, _TILE_TARGET // (itemsize * max(c, 1)))
    cap = (cap // 128) * 128
    full128 = (hw // 128) * 128
    t = min(cap, full128)
    best = None
    d = 128
    while d <= t:
        if hw % d == 0:
            best = d
        d += 128
    return best if best is not None else t


# ----------------------------------------------------------------------------
# Kernel 1: per-tile channel statistics + per-pixel channel mean  (one read of x)
# ----------------------------------------------------------------------------
def _stats_kernel(x_ref, samean_ref, part_ref, *, hw, thw, masked):
    xb = x_ref[0].astype(jnp.float32)                       # (C, THW), lane = spatial
    # per-pixel mean over channels (torch.mean(x, 1)) -> lane-dense output slab
    # (out-of-bounds output lanes of a ragged last tile are dropped on store)
    samean_ref[0] = jnp.mean(xb, axis=0, keepdims=True)     # (1, THW)

    if masked:  # ragged last tile: zero padding lanes before the reductions
        t = pl.program_id(1)
        lane = lax.broadcasted_iota(jnp.int32, xb.shape, 1)
        xb = jnp.where(lane < (hw - t * thw), xb, 0.0)

    # NOTE: variance is later formed as E[x^2]-E[x]^2 in f32 (clamped at 0); adequate for
    # feature maps, but catastrophic cancellation is possible when |mean| >> std.
    s = jnp.sum(xb, axis=1, keepdims=True)                  # (C, 1)
    ss = jnp.sum(xb * xb, axis=1, keepdims=True)            # (C, 1)
    part_ref[0, 0] = jnp.concatenate([s, ss], axis=1)       # (C, 2)


def spatial_mean_and_partial_stats(x3):
    """x3: (N, C, HW) -> (channel_mean (N,1,HW) f32, partials (N,nt,C,2) f32)."""
    N, C, HW = x3.shape
    thw = _choose_spatial_tile(HW, C, x3.dtype.itemsize)
    nt = pl.cdiv(HW, thw)
    masked = (HW % thw) != 0
    kern = functools.partial(_stats_kernel, hw=HW, thw=thw, masked=masked)
    samean, part = pl.pallas_call(
        kern,
        out_shape=(jax.ShapeDtypeStruct((N, 1, HW), jnp.float32),
                   jax.ShapeDtypeStruct((N, nt, C, 2), jnp.float32)),
        grid=(N, nt),
        in_specs=[pl.BlockSpec((1, C, thw), lambda n, t: (n, 0, t))],
        out_specs=(pl.BlockSpec((1, 1, thw), lambda n, t: (n, 0, t)),
                   pl.BlockSpec((1, 1, C, 2), lambda n, t: (n, t, 0, 0))),
        compiler_params=pltpu.CompilerParams(
            dimension_semantics=("parallel", "parallel"),   # both axes shard across cores
            vmem_limit_bytes=_VMEM_LIMIT),
    )(x3)
    return samean, part


def cca_from_partials(part, hw, w1, b1, w2, b2):
    """Tiny finalize in plain JAX: contrast(std)+mean, then the CCA MLP.  part: (N,nt,C,2)."""
    tot = jnp.sum(part, axis=1)                             # (N, C, 2)
    inv = 1.0 / hw
    mean = tot[..., 0] * inv
    var = jnp.maximum(tot[..., 1] * inv - mean * mean, 0.0)
    y = jnp.sqrt(var) + mean                                # contrast + avg_pool, (N, C)
    h = y @ w1 + b1                                         # (N, red)
    h = jnp.where(h >= 0.0, h, _NEG_SLOPE * h)              # LeakyReLU(0.05)
    return h @ w2.T + b2.reshape(1, -1)                     # (N, C)


# ----------------------------------------------------------------------------
# Kernel 2: fused attention gate  out = x * sigmoid(ca + sa)   (read x, write out)
# ----------------------------------------------------------------------------
def _gate_kernel(x_ref, ca_ref, sa_ref, o_ref):
    z = ca_ref[...] + sa_ref[...]                # (1,C,1)+(1,1,THW) -> (1,C,THW), f32
    att = 0.5 * (jnp.tanh(0.5 * z) + 1.0)        # sigmoid with a single EUP op / element
    o_ref[...] = (x_ref[...].astype(jnp.float32) * att).astype(o_ref.dtype)


def gated_output(x3, ca3, sa3):
    N, C, HW = x3.shape
    thw = _choose_spatial_tile(HW, C, x3.dtype.itemsize)
    nt = pl.cdiv(HW, thw)
    return pl.pallas_call(
        _gate_kernel,
        out_shape=jax.ShapeDtypeStruct((N, C, HW), x3.dtype),   # native-dtype writeback
        grid=(N, nt),
        in_specs=[pl.BlockSpec((1, C, thw), lambda n, t: (n, 0, t)),
                  pl.BlockSpec((1, C, 1), lambda n, t: (n, 0, 0)),
                  pl.BlockSpec((1, 1, thw), lambda n, t: (n, 0, t))],
        out_specs=pl.BlockSpec((1, C, thw), lambda n, t: (n, 0, t)),
        compiler_params=pltpu.CompilerParams(
            dimension_semantics=("parallel", "parallel"),
            vmem_limit_bytes=_VMEM_LIMIT),
    )(x3, ca3, sa3)


# ----------------------------------------------------------------------------
# Tiny plain-JAX glue for the single-channel spatial branch (~1/C the size of x)
# ----------------------------------------------------------------------------
def _conv7x7_s3(m, w, b):
    """Single-channel valid conv, kernel 7x7, stride 3.  m: (N,H,W) -> (N,Ho,Wo)."""
    # TODO(synk): single-channel strided conv on the (N,H,W) mean map is kept in XLA
    # (lax.conv); it has no lane-dense rectangular-tile Pallas fit and negligible traffic.
    out = lax.conv_general_dilated(
        m[:, None].astype(jnp.float32), w[None, None].astype(jnp.float32),
        window_strides=(3, 3), padding="VALID",
        dimension_numbers=("NCHW", "OIHW", "NCHW"))
    return out[:, 0] + b


def _bilinear_matrix(in_size, out_size):
    """(out,in) interpolation matrix: F.interpolate(mode='bilinear', align_corners=False)."""
    scale = in_size / out_size
    src = (jnp.arange(out_size, dtype=jnp.float32) + 0.5) * scale - 0.5
    src = jnp.maximum(src, 0.0)
    i0 = jnp.clip(jnp.floor(src).astype(jnp.int32), 0, in_size - 1)
    i1 = jnp.clip(i0 + 1, 0, in_size - 1)
    w1 = src - i0.astype(jnp.float32)
    w0 = 1.0 - w1
    return (jax.nn.one_hot(i0, in_size, dtype=jnp.float32) * w0[:, None]
            + jax.nn.one_hot(i1, in_size, dtype=jnp.float32) * w1[:, None])


def _bilinear_upsample(s, H, W):
    """s: (N, Ho, Wo) -> (N, H, W) via two small interpolation matmuls."""
    Mh = _bilinear_matrix(s.shape[1], H)          # (H, Ho)
    Mw = _bilinear_matrix(s.shape[2], W)          # (W, Wo)
    hi = jax.lax.Precision.HIGHEST
    up = jnp.einsum('ha,naw->nhw', Mh, s, precision=hi)
    up = jnp.einsum('wb,nhb->nhw', Mw, up, precision=hi)
    return up


# ----------------------------------------------------------------------------
# RAMm forward (dtype-preserving: bf16 in -> bf16 out, f32 in -> f32 out)
# ----------------------------------------------------------------------------
def ramm_forward(x_nchw, params):
    N, C, H, W = x_nchw.shape
    assert H >= 7 and W >= 7, "7x7/stride-3 conv requires H, W >= 7"
    HW = H * W
    x3 = x_nchw.reshape(N, C, HW)

    # K1: one pass over x -> per-pixel channel mean + per-tile channel stats
    samean, part = spatial_mean_and_partial_stats(x3)
    ca = cca_from_partials(part, float(HW),
                           params["cca_w1"], params["cca_b1"],
                           params["cca_w2"], params["cca_b2"])        # (N, C), f32

    # spatial-attention branch (tiny single-channel path)
    sa_map = samean.reshape(N, H, W)
    s = _conv7x7_s3(sa_map, params["sa_w"], params["sa_b"])           # (N, Ho, Wo)
    sa_up = _bilinear_upsample(s, H, W)                               # (N, H, W), f32

    # K2: out = x * sigmoid(ca + sa)
    out3 = gated_output(x3, ca.reshape(N, C, 1),
                        sa_up.reshape(N, 1, HW).astype(jnp.float32))
    return out3.reshape(N, C, H, W)


# ----------------------------------------------------------------------------
# Pure-JAX reference (independent math path, f32) for the numerical self-check
# ----------------------------------------------------------------------------
def _conv7x7_s3_ref(m, w, b):
    N, H, W = m.shape
    Ho = (H - 7) // 3 + 1
    Wo = (W - 7) // 3 + 1
    acc = jnp.zeros((N, Ho, Wo), jnp.float32)
    for i in range(7):
        for j in range(7):
            acc = acc + w[i, j] * m[:, i:i + 3 * Ho:3, j:j + 3 * Wo:3]
    return acc + b


def ramm_reference(x_nchw, params):
    x = x_nchw.astype(jnp.float32)
    N, C, H, W = x.shape
    mean = jnp.mean(x, axis=(2, 3), keepdims=True)
    var = jnp.mean((x - mean) ** 2, axis=(2, 3), keepdims=True)       # biased /HW (torch ref)
    y = (jnp.sqrt(var) + mean).reshape(N, C)                          # contrast + avg_pool
    h = y @ params["cca_w1"] + params["cca_b1"]
    h = jnp.where(h >= 0.0, h, _NEG_SLOPE * h)
    ca = h @ params["cca_w2"].T + params["cca_b2"].reshape(1, C)      # (N, C)
    sa_mean = jnp.mean(x, axis=1)                                     # (N, H, W)
    s = _conv7x7_s3_ref(sa_mean, params["sa_w"], params["sa_b"])
    sa = _bilinear_upsample(s, H, W)
    att = jax.nn.sigmoid(ca[:, :, None, None] + sa[:, None, :, :])
    return x * att


# ----------------------------------------------------------------------------
# Deterministic synthetic parameters
#   cca_w1 = conv1.weight (red,C,1,1) transposed -> (C, red)
#   cca_w2 = conv2.weight (C,red,1,1) squeezed   -> (C, red)
# ----------------------------------------------------------------------------
def init_params(key, C, reduction=4):
    red = max(C // reduction, 1)
    keys = iter(jax.random.split(key, 8))

    def w(shape, scale=0.1):
        return (scale * jax.random.normal(next(keys), shape)).astype(jnp.float32)

    return {
        "cca_w1": w((C, red)),
        "cca_b1": w((1, red), 0.02),
        "cca_w2": w((C, red)),
        "cca_b2": w((C, 1), 0.02),
        "sa_w": w((7, 7)),
        "sa_b": w((), 0.02),
    }


if __name__ == "__main__":
    N, C, H, W = 2, 16, 16, 16          # n_feats=16, reduction=4
    key = jax.random.PRNGKey(0)
    kx, kp = jax.random.split(key)
    params = init_params(kp, C)

    fwd = jax.jit(ramm_forward)
    ref = jax.jit(ramm_reference)

    # f32 activation path (tight numerical check)
    x32 = jax.random.normal(kx, (N, C, H, W), dtype=jnp.float32)
    y32 = jax.block_until_ready(fwd(x32, params))
    assert y32.shape == (N, C, H, W) and y32.dtype == jnp.float32
    assert bool(jnp.all(jnp.isfinite(y32)))
    r32 = jax.block_until_ready(ref(x32, params))
    assert bool(jnp.allclose(y32, r32, atol=1e-3, rtol=1e-3)), "f32 mismatch vs reference"

    # bf16 activation path (native-dtype HBM I/O; compute stays f32 in-register)
    x16 = x32.astype(jnp.bfloat16)
    y16 = jax.block_until_ready(fwd(x16, params))
    assert y16.dtype == jnp.bfloat16
    r16 = jax.block_until_ready(ref(x16, params))
    assert bool(jnp.allclose(y16.astype(jnp.float32), r16, atol=5e-2, rtol=5e-2)), \
        "bf16 mismatch vs reference"

    # ragged spatial size (H*W not a multiple of 128) exercises the masked last tile
    xr = jax.random.normal(jax.random.PRNGKey(1), (1, C, 15, 17), dtype=jnp.float32)
    yr = jax.block_until_ready(fwd(xr, params))
    rr = jax.block_until_ready(ref(xr, params))
    assert bool(jnp.allclose(yr, rr, atol=1e-3, rtol=1e-3)), "ragged mismatch vs reference"

    print("KERNEL_OK")
</pallas_src>

<mosaic_0001>
module attributes {stable_mosaic.version = 11 : i64} {
  func.func @_stats_kernel(%arg0: i32, %arg1: i32, %arg2: memref<1x16x256xf32, #tpu.memory_space<vmem>>, %arg3: memref<1x1x256xf32, #tpu.memory_space<vmem>>, %arg4: memref<1x1x16x2xf32, #tpu.memory_space<vmem>>) attributes {dimension_semantics = [#tpu.dimension_semantics<parallel>, #tpu.dimension_semantics<parallel>], iteration_bounds = array<i64: 2, 1>, scalar_prefetch = 0 : i64, scratch_operands = 0 : i64, tpu.core_type = #tpu.core_type<tc>, window_params = [{transform_indices = @transform_0, window_bounds = array<i64: 1, 16, 256>}, {transform_indices = @transform_1, window_bounds = array<i64: 1, 1, 256>}, {transform_indices = @transform_2, window_bounds = array<i64: 1, 1, 16, 2>}]} {
    %c0 = arith.constant 0 : index
    %c0_0 = arith.constant 0 : index
    %c0_1 = arith.constant 0 : index
    %0 = vector.load %arg2[%c0, %c0_0, %c0_1] : memref<1x16x256xf32, #tpu.memory_space<vmem>>, vector<1x16x256xf32>
    %1 = vector.shape_cast %0 : vector<1x16x256xf32> to vector<16x256xf32>
    %cst = arith.constant dense<0.000000e+00> : vector<256xf32>
    %2 = vector.multi_reduction <add>, %1, %cst [0] : vector<16x256xf32> to vector<256xf32>
    %3 = vector.shape_cast %2 : vector<256xf32> to vector<1x256xf32>
    %cst_2 = arith.constant 1.600000e+01 : f32
    %4 = vector.broadcast %cst_2 : f32 to vector<1x256xf32>
    %5 = arith.divf %3, %4 : vector<1x256xf32>
    %c0_3 = arith.constant 0 : index
    %c0_4 = arith.constant 0 : index
    %c0_5 = arith.constant 0 : index
    %6 = vector.load %arg3[%c0_3, %c0_4, %c0_5] : memref<1x1x256xf32, #tpu.memory_space<vmem>>, vector<1x1x256xf32>
    %7 = vector.shape_cast %6 : vector<1x1x256xf32> to vector<1x256xf32>
    %8 = vector.shape_cast %5 : vector<1x256xf32> to vector<1x1x256xf32>
    tpu.vector_store %arg3[%c0_3, %c0_4, %c0_5], %8 {strides = array<i32>} : memref<1x1x256xf32, #tpu.memory_space<vmem>>, vector<1x1x256xf32>,
    %cst_6 = arith.constant dense<0.000000e+00> : vector<16xf32>
    %9 = vector.multi_reduction <add>, %1, %cst_6 [1] : vector<16x256xf32> to vector<16xf32>
    %10 = vector.shape_cast %9 : vector<16xf32> to vector<16x1xf32>
    %11 = arith.mulf %1, %1 : vector<16x256xf32>
    %cst_7 = arith.constant dense<0.000000e+00> : vector<16xf32>
    %12 = vector.multi_reduction <add>, %11, %cst_7 [1] : vector<16x256xf32> to vector<16xf32>
    %13 = vector.shape_cast %12 : vector<16xf32> to vector<16x1xf32>
    %14 = tpu.concatenate %10, %13 in 1 : vector<16x1xf32>, vector<16x1xf32> -> vector<16x2xf32>
    %c0_8 = arith.constant 0 : index
    %c0_9 = arith.constant 0 : index
    %c0_10 = arith.constant 0 : index
    %c0_11 = arith.constant 0 : index
    %15 = vector.load %arg4[%c0_8, %c0_9, %c0_10, %c0_11] : memref<1x1x16x2xf32, #tpu.memory_space<vmem>>, vector<1x1x16x2xf32>
    %16 = vector.shape_cast %15 : vector<1x1x16x2xf32> to vector<16x2xf32>
    %17 = vector.shape_cast %14 : vector<16x2xf32> to vector<1x1x16x2xf32>
    tpu.vector_store %arg4[%c0_8, %c0_9, %c0_10, %c0_11], %17 {strides = array<i32>} : memref<1x1x16x2xf32, #tpu.memory_space<vmem>>, vector<1x1x16x2xf32>,
    return
  }
  func.func @transform_0(%arg0: i32, %arg1: i32) -> (i32, i32, i32) {
    %c0_i32 = arith.constant 0 : i32
    %c0_i32_0 = arith.constant 0 : i32
    return %arg0, %c0_i32, %arg1 : i32, i32, i32
  }
  func.func @transform_1(%arg0: i32, %arg1: i32) -> (i32, i32, i32) {
    %c0_i32 = arith.constant 0 : i32
    %c0_i32_0 = arith.constant 0 : i32
    return %arg0, %c0_i32, %arg1 : i32, i32, i32
  }
  func.func @transform_2(%arg0: i32, %arg1: i32) -> (i32, i32, i32, i32) {
    %c0_i32 = arith.constant 0 : i32
    %c0_i32_0 = arith.constant 0 : i32
    %c0_i32_1 = arith.constant 0 : i32
    return %arg0, %arg1, %c0_i32, %c0_i32_0 : i32, i32, i32, i32
  }
}

module attributes {stable_mosaic.version = 11 : i64} {
  func.func @_gate_kernel(%arg0: i32, %arg1: i32, %arg2: memref<1x16x256xf32, #tpu.memory_space<vmem>>, %arg3: memref<1x16x1xf32, #tpu.memory_space<vmem>>, %arg4: memref<1x1x256xf32, #tpu.memory_space<vmem>>, %arg5: memref<1x16x256xf32, #tpu.memory_space<vmem>>) attributes {dimension_semantics = [#tpu.dimension_semantics<parallel>, #tpu.dimension_semantics<parallel>], iteration_bounds = array<i64: 2, 1>, scalar_prefetch = 0 : i64, scratch_operands = 0 : i64, tpu.core_type = #tpu.core_type<tc>, window_params = [{transform_indices = @transform_0, window_bounds = array<i64: 1, 16, 256>}, {transform_indices = @transform_1, window_bounds = array<i64: 1, 16, 1>}, {transform_indices = @transform_2, window_bounds = array<i64: 1, 1, 256>}, {transform_indices = @transform_3, window_bounds = array<i64: 1, 16, 256>}]} {
    %c0 = arith.constant 0 : index
    %c0_0 = arith.constant 0 : index
    %c0_1 = arith.constant 0 : index
    %0 = vector.load %arg3[%c0, %c0_0, %c0_1] : memref<1x16x1xf32, #tpu.memory_space<vmem>>, vector<1x16x1xf32>
    %c0_2 = arith.constant 0 : index
    %c0_3 = arith.constant 0 : index
    %c0_4 = arith.constant 0 : index
    %1 = vector.load %arg4[%c0_2, %c0_3, %c0_4] : memref<1x1x256xf32, #tpu.memory_space<vmem>>, vector<1x1x256xf32>
    %2 = vector.broadcast %0 : vector<1x16x1xf32> to vector<1x16x256xf32>
    %3 = vector.broadcast %1 : vector<1x1x256xf32> to vector<1x16x256xf32>
    %4 = arith.addf %2, %3 : vector<1x16x256xf32>
    %cst = arith.constant 5.000000e-01 : f32
    %5 = vector.broadcast %cst : f32 to vector<1x16x256xf32>
    %6 = arith.mulf %5, %4 : vector<1x16x256xf32>
    %7 = math.tanh %6 : vector<1x16x256xf32>
    %cst_5 = arith.constant 1.000000e+00 : f32
    %8 = vector.broadcast %cst_5 : f32 to vector<1x16x256xf32>
    %9 = arith.addf %7, %8 : vector<1x16x256xf32>
    %cst_6 = arith.constant 5.000000e-01 : f32
    %10 = vector.broadcast %cst_6 : f32 to vector<1x16x256xf32>
    %11 = arith.mulf %10, %9 : vector<1x16x256xf32>
    %c0_7 = arith.constant 0 : index
    %c0_8 = arith.constant 0 : index
    %c0_9 = arith.constant 0 : index
    %12 = vector.load %arg2[%c0_7, %c0_8, %c0_9] : memref<1x16x256xf32, #tpu.memory_space<vmem>>, vector<1x16x256xf32>
    %13 = arith.mulf %12, %11 : vector<1x16x256xf32>
    %c0_10 = arith.constant 0 : index
    %c0_11 = arith.constant 0 : index
    %c0_12 = arith.constant 0 : index
    %14 = vector.load %arg5[%c0_10, %c0_11, %c0_12] : memref<1x16x256xf32, #tpu.memory_space<vmem>>, vector<1x16x256xf32>
    tpu.vector_store %arg5[%c0_10, %c0_11, %c0_12], %13 {strides = array<i32>} : memref<1x16x256xf32, #tpu.memory_space<vmem>>, vector<1x16x256xf32>,
    return
  }
  func.func @transform_0(%arg0: i32, %arg1: i32) -> (i32, i32, i32) {
    %c0_i32 = arith.constant 0 : i32
    %c0_i32_0 = arith.constant 0 : i32
    return %arg0, %c0_i32, %arg1 : i32, i32, i32
  }
  func.func @transform_1(%arg0: i32, %arg1: i32) -> (i32, i32, i32) {
    %c0_i32 = arith.constant 0 : i32
    %c0_i32_0 = arith.constant 0 : i32
    %c0_i32_1 = arith.constant 0 : i32
    return %arg0, %c0_i32, %c0_i32_0 : i32, i32, i32
  }
  func.func @transform_2(%arg0: i32, %arg1: i32) -> (i32, i32, i32) {
    %c0_i32 = arith.constant 0 : i32
    %c0_i32_0 = arith.constant 0 : i32
    return %arg0, %c0_i32, %arg1 : i32, i32, i32
  }
  func.func @transform_3(%arg0: i32, %arg1: i32) -> (i32, i32, i32) {
    %c0_i32 = arith.constant 0 : i32
    %c0_i32_0 = arith.constant 0 : i32
    return %arg0, %c0_i32, %arg1 : i32, i32, i32
  }
}

</mosaic_0001>

<llo_original>
// kernel: ramm_forward.2
$region0: #{ramm_forward.2}
  #allocation0 [shape = 'u32[]', space=smem, size = 0x4, offset = 0x4, fixed_abs, tag = 'smem constant byte address 0x4 - core index']
  #allocation1 [shape = 'u32[144,128]{1,0:T(1,128)}', space=vmem, size = 0x12000, scoped, tag = 'internal scratch']
  %s0 = inlined_call_operand.hbm [shape: f32[2,16,256], index: 0, kind: input, shape index: {}]
  %s1 = inlined_call_operand.hbm [shape: f32[2,1,256], index: 1, kind: output, shape index: {0}]
  %s2 = inlined_call_operand.hbm [shape: f32[2,1,16,2], index: 2, kind: output, shape index: {1}]
  %3 = xla_tuple %s1, %s2
  %s4 = sld [smem:[#allocation0]]
  $region49: #{ramm_forward.2} parent=0
    _
  %s6 = ssub.s32 1, %s4
  %s7 = scalar_select 0, %s6, %s4
  $region1: #{ramm_forward.2} parent=0
    #allocation2 [shape = 'u8[32768]{0}', space=vmem, size = 0x8000, scoped, tag = 'input window, operand 0']
    #allocation3 [shape = 's32[2]{0}', space=sflag, size = 0x8, scoped, tag = 'scoped memory for ramm_forward.2']
    #allocation4 [shape = 's32[2]{0}', space=sflag, size = 0x8, scoped, tag = 'scoped memory for ramm_forward.2']
    #allocation5 [shape = 'u8[2048]{0}', space=vmem, size = 0x800, scoped, tag = 'output window, operand 0']
    #allocation6 [shape = 'u8[16384]{0}', space=vmem, size = 0x4000, scoped, tag = 'output window, operand 1']
    #allocation7 [shape = 's32[2]{0}', space=sflag, size = 0x8, scoped, tag = 'scoped memory for ramm_forward.2']
    %8 = vsyncpa [#allocation3], 0
    %s9 = scalar_lea.sflag [#allocation3], 1
    %10 = vsyncpa %s9, 0
    %11 = vsyncpa [#allocation4], 0
    %s12 = scalar_lea.sflag [#allocation4], 1
    %13 = vsyncpa %s12, 0
    %14 = vsyncpa [#allocation7], 0
    %s15 = scalar_lea.sflag [#allocation7], 1
    %16 = vsyncpa %s15, 0
    loop: start=0, step=1, limit=4
    $region2: #{ramm_forward.2} parent=1 // loop_pre_header
      _
    $region3: #{ramm_forward.2} parent=1 // loop_header
      %s18 = sphi 0, %s22
      %p19 = scmp.ge.s32.totalorder %s18, 4
      %s25 = sphi 0, %s37
      %s26 = sphi 0, %s33
      %s27 = sphi 0, %s25
      %s28 = sphi 0, %s26
      %s29 = sphi 0, %s27
      %s30 = sphi 0, %s28
      %s42 = sphi 0, %s44
      %s45 = sphi 0, %s42
      %s46 = sphi 0, %s45
      %s62 = sphi 0, %s46
      %s70 = sphi 0, %s72
      %s73 = sphi 0, %s70
      %s74 = sphi 0, %s73
      %s90 = sphi 0, %s74
      %s98 = sphi 0, %s100
      %s101 = sphi 0, %s98
      %s102 = sphi 0, %s101
      %s118 = sphi 0, %s102
    $region4: #{ramm_forward.2} parent=1 // loop_header_branch
      %21 = sbr.rel (%p19) target = $region8
    $region5: #{ramm_forward.2} parent=1 // loop_body
      %s23 = ssub.s32 %s18, 1
      %s24 = ssub.s32 %s18, 2
      %s31 = sadd.s32 1, %s26
      %p32 = scmp.ge.s32.totalorder %s31, 1
      %s33 = scalar_select %p32, 0, %s31
      %s34 = sadd.s32 1, %s25
      %s35 = scalar_select %p32, %s34, %s25
      %p36 = scmp.ge.s32.totalorder %s35, 2
      %s37 = scalar_select %p36, 0, %s35
      %s38 = ssub.s32 %s25, %s37
      %s39 = ssub.s32 %s26, %s33
      %s40 = sor.u32 %s38, %s39
      %p41 = scmp.eq.s32.totalorder %s40, 0
      %s43 = sadd.s32 %s42, 1
      %s44 = scalar_select %p41, %s42, %s43
      %p47 = pneg %p41
      %p48 = scmp.eq.s32.totalorder %s18, 1
      %p49 = por %p47, %p48
      %p50 = scmp.ne.s32.totalorder %s42, %s45
      %p51 = scmp.eq.s32.totalorder %s18, 0
      %p52 = por %p50, %p51
      %p53 = scmp.ne.s32.totalorder %s42, %s45
      %p54 = scmp.eq.s32.totalorder %s23, 1
      %p55 = por %p53, %p54
      %p56 = scmp.ne.s32.totalorder %s45, %s46
      %p57 = scmp.eq.s32.totalorder %s23, 0
      %p58 = por %p56, %p57
      %p59 = scmp.ne.s32.totalorder %s45, %s46
      %p60 = scmp.eq.s32.totalorder %s24, 1
      %p61 = por %p59, %p60
      %p63 = scmp.ne.s32.totalorder %s46, %s62
      %p64 = scmp.eq.s32.totalorder %s24, 0
      %p65 = por %p63, %p64
      %s66 = ssub.s32 %s25, %s37
      %s67 = ssub.s32 %s26, %s33
      %s68 = sor.u32 %s66, %s67
      %p69 = scmp.eq.s32.totalorder %s68, 0
      %s71 = sadd.s32 %s70, 1
      %s72 = scalar_select %p69, %s70, %s71
      %p75 = pneg %p69
      %p76 = scmp.eq.s32.totalorder %s18, 1
      %p77 = por %p75, %p76
      %p78 = scmp.ne.s32.totalorder %s70, %s73
      %p79 = scmp.eq.s32.totalorder %s18, 0
      %p80 = por %p78, %p79
      %p81 = scmp.ne.s32.totalorder %s70, %s73
      %p82 = scmp.eq.s32.totalorder %s23, 1
      %p83 = por %p81, %p82
      %p84 = scmp.ne.s32.totalorder %s73, %s74
      %p85 = scmp.eq.s32.totalorder %s23, 0
      %p86 = por %p84, %p85
      %p87 = scmp.ne.s32.totalorder %s73, %s74
      %p88 = scmp.eq.s32.totalorder %s24, 1
      %p89 = por %p87, %p88
      %p91 = scmp.ne.s32.totalorder %s74, %s90
      %p92 = scmp.eq.s32.totalorder %s24, 0
      %p93 = por %p91, %p92
      %s94 = ssub.s32 %s25, %s37
      %s95 = ssub.s32 %s26, %s33
      %s96 = sor.u32 %s94, %s95
      %p97 = scmp.eq.s32.totalorder %s96, 0
      %s99 = sadd.s32 %s98, 1
      %s100 = scalar_select %p97, %s98, %s99
      %p103 = pneg %p97
      %p104 = scmp.eq.s32.totalorder %s18, 1
      %p105 = por %p103, %p104
      %p106 = scmp.ne.s32.totalorder %s98, %s101
      %p107 = scmp.eq.s32.totalorder %s18, 0
      %p108 = por %p106, %p107
      %p109 = scmp.ne.s32.totalorder %s98, %s101
      %p110 = scmp.eq.s32.totalorder %s23, 1
      %p111 = por %p109, %p110
      %p112 = scmp.ne.s32.totalorder %s101, %s102
      %p113 = scmp.eq.s32.totalorder %s23, 0
      %p114 = por %p112, %p113
      %p115 = scmp.ne.s32.totalorder %s101, %s102
      %p116 = scmp.eq.s32.totalorder %s24, 1
      %p117 = por %p115, %p116
      %p119 = scmp.ne.s32.totalorder %s102, %s118
      %p120 = scmp.eq.s32.totalorder %s24, 0
      %p121 = por %p119, %p120
      %p122 = scmp.le.s32.totalorder 1, %s18
      %p123 = scmp.lt.s32.totalorder %s18, 3
      %p124 = pnand %p122, %p123
      %p125 = pneg %p124
      // Predicated region
      $region9: #{ramm_forward.2} parent=5 // pred_check
        _
      $region10: #{ramm_forward.2} parent=5 // pred_check_branch
        %127 = sbr.rel (%p124) target = $region12
      $region11: #{ramm_forward.2} parent=5 // pred_region
        %s128 = ssub.s32 %s18, 1
      $region12: #{ramm_forward.2} parent=5 // pred_fallthru
        _
      %p129 = scmp.lt.s32.totalorder %s18, 2
      // Predicated region
      $region13: #{ramm_forward.2} parent=5 // pred_check
        %p130 = pneg %p129
      $region14: #{ramm_forward.2} parent=5 // pred_check_branch
        %132 = sbr.rel (%p130) target = $region16
      $region15: #{ramm_forward.2} parent=5 // pred_region
        // Predicated region
        $region17: #{ramm_forward.2} parent=15 // pred_check
          %p133 = pneg %p52
        $region18: #{ramm_forward.2} parent=15 // pred_check_branch
          %135 = sbr.rel (%p133) target = $region20
        $region19: #{ramm_forward.2} parent=15 // pred_region
          %s136 = sand.u32 %s42, 1
          %s137 = scalar_lea.sflag [#allocation3], %s136
          %s138 = sand.u32 %s42, 1
          %s139 = smul.addr %s138, 32
          %s140 = scalar_lea.vmem [#allocation2], %s139
          %s141 = smul.u32 2, %s26
          %s143 = ssub.s32 512, 512
          %144 = vsyncadd %s137, %s143
          %s145 = smul.addr %s25, 4
          %s146 = sadd.s32 %s141, %s145
          %s147 = smul.addr %s146, 128
          %s148 = scalar_lea.hbm %s0, %s147
          %s149 = sshll.u32 %s140, 4
          %s150 = int_to_ptr.vmem [resolvable:$true] %s149
          %155 = dma.hbm_to_vmem [thread:$0]  %s148, 512, %s150, %s137, 256, 256, 16
        $region20: #{ramm_forward.2} parent=15 // pred_fallthru
          _
      $region16: #{ramm_forward.2} parent=5 // pred_fallthru
        _
      %p156 = scmp.le.s32.totalorder 1, %s18
      %p157 = scmp.lt.s32.totalorder %s18, 3
      %p158 = pnand %p156, %p157
      %p159 = pneg %p158
      // Predicated region
      $region21: #{ramm_forward.2} parent=5 // pred_check
        _
      $region22: #{ramm_forward.2} parent=5 // pred_check_branch
        %161 = sbr.rel (%p158) target = $region24
      $region23: #{ramm_forward.2} parent=5 // pred_region
        %s162 = ssub.s32 %s18, 1
        %s163 = sand.u32 %s45, 1
        %s164 = scalar_lea.sflag [#allocation3], %s163
        %s165 = sand.u32 %s45, 1
        %s166 = smul.addr %s165, 32
        %s167 = scalar_lea.vmem [#allocation2], %s166
        // Predicated region
        $region25: #{ramm_forward.2} parent=23 // pred_check
          %p168 = pneg %p58
        $region26: #{ramm_forward.2} parent=23 // pred_check_branch
          %170 = sbr.rel (%p168) target = $region28
        $region27: #{ramm_forward.2} parent=23 // pred_region
          %171 = dma.done %s164, 512
        $region28: #{ramm_forward.2} parent=23 // pred_fallthru
          _
        %s172 = sand.u32 %s45, 1
        %s173 = scalar_lea.sflag [#allocation3], %s172
        %s174 = sand.u32 %s45, 1
        %s175 = smul.addr %s174, 32
        %s176 = scalar_lea.vmem [#allocation2], %s175
        %p177 = pneg %p58
        %p178 = pneg %p55
        %p179 = pneg %p86
        %p180 = pneg %p83
        %s181 = sand.u32 %s73, 1
        %s182 = scalar_lea.sflag [#allocation4], %s181
        %s183 = sand.u32 %s73, 1
        %s184 = smul.addr %s183, 2
        %s185 = scalar_lea.vmem [#allocation5], %s184
        %p186 = pneg %p114
        %p187 = pneg %p111
        %s188 = sand.u32 %s101, 1
        %s189 = scalar_lea.sflag [#allocation7], %s188
        %s190 = sand.u32 %s101, 1
        %s191 = smul.addr %s190, 16
        %s192 = scalar_lea.vmem [#allocation6], %s191
        %s193 = smul.u32 2, %s28
        %s194 = smul.u32 2, %s28
        %v195 = vld [vmem:[%s167] sm:$0xff]
        %v196 = vld [vmem:[%s167 + $0x8] sm:$0xff]
        %v197 = vld [vmem:[%s167 + $0x10] sm:$0xff]
        %v198 = vld [vmem:[%s167 + $0x18] sm:$0xff]
        %v199 = vadd.f32 %v195, %v197
        %v200 = vrot.slane %v199, 4
        %v201 = vadd.f32 %v199, %v200
        %v202 = vrot.slane %v201, 2
        %v203 = vadd.f32 %v201, %v202
        %v204 = vrot.slane %v203, 1
        %v205 = vadd.f32 %v203, %v204
        %v206 = vadd.f32 %v196, %v198
        %v207 = vrot.slane %v206, 4
        %v208 = vadd.f32 %v206, %v207
        %v209 = vrot.slane %v208, 2
        %v210 = vadd.f32 %v208, %v209
        %v211 = vrot.slane %v210, 1
        %v212 = vadd.f32 %v210, %v211
        %v213 = vrcp.pop 16.0
        %v214 = vmul.f32 %v205, %v213
        %v215 = vmul.f32 %v212, %v213
        %v218 = vcombine.low %v214, %v215
        %v220 = vunpack.c.l.s4 1966171168
        %v221 = vunpack.c.0.s8 %v220
        %v222 = vlaneseq
        %v223 = vshrl.u32 %v222, 7
        %v224 = vsub.s32 %v221, %v223
        %v225 = vrot.slane %v218, %v224
        %v227 = vunpack.c.l.s4 1966171168
        %v228 = vunpack.c.0.s8 %v227
        %v229 = vlaneseq
        %v230 = vshrl.u32 %v229, 7
        %v231 = vsub.s32 %v228, %v230
        %v232 = vrot.slane %v225, %v231
        %v234 = vlaneseq
        %vm235 = vcmp.ge.s32.totalorder %v234, 0
        %vm236 = vcmp.lt.s32.totalorder %v234, 256
        %vm237 = vmand %vm235, %vm236
        %238 = vst.msk [vmem:[%s185] sm:$0x3] %vm237, %v232
        %v239 = vadd.f32 %v195, %v196
        %240 = vadd.xlane.f32.xlu0 %v239
        %v241 = vpop.xlane.xlu0 %240
        %v242 = vadd.f32 %v197, %v198
        %243 = vadd.xlane.f32.xlu0 %v242
        %v244 = vpop.xlane.xlu0 %243
        %v245 = vmul.f32 %v195, %v195
        %v246 = vmul.f32 %v196, %v196
        %v247 = vmul.f32 %v197, %v197
        %v248 = vmul.f32 %v198, %v198
        %v249 = vadd.f32 %v245, %v246
        %250 = vadd.xlane.f32.xlu0 %v249
        %v251 = vpop.xlane.xlu0 %250
        %v252 = vadd.f32 %v247, %v248
        %253 = vadd.xlane.f32.xlu0 %v252
        %v254 = vpop.xlane.xlu0 %253
        %vm255 = vcmask 7168
        %v256 = vsel %vm255, %v241, %v251
        %v257 = vsel %vm255, %v244, %v254
        %vm258 = vcmask 15360
        %259 = vst.msk [vmem:[%s192] sm:$0xff] %vm258, %v256
        %260 = vst.msk [vmem:[%s192 + $0x8] sm:$0xff] %vm258, %v257
        %s261 = sand.u32 %s73, 1
        %s262 = scalar_lea.sflag [#allocation4], %s261
        %s263 = sand.u32 %s73, 1
        %s264 = smul.addr %s263, 2
        %s265 = scalar_lea.vmem [#allocation5], %s264
        %s266 = sand.u32 %s101, 1
        %s267 = scalar_lea.sflag [#allocation7], %s266
        %s268 = sand.u32 %s101, 1
        %s269 = smul.addr %s268, 16
        %s270 = scalar_lea.vmem [#allocation6], %s269
        // Predicated region
        $region29: #{ramm_forward.2} parent=23 // pred_check
          %p271 = pneg %p83
        $region30: #{ramm_forward.2} parent=23 // pred_check_branch
          %273 = sbr.rel (%p271) target = $region32
        $region31: #{ramm_forward.2} parent=23 // pred_region
          %s274 = smul.u32 2, %s28
          %s276 = ssub.s32 32, 32
          %277 = vsyncadd %s262, %s276
          %s278 = smul.addr %s27, 2
          %s279 = sadd.s32 %s274, %s278
          %s280 = smul.addr %s279, 16
          %s281 = scalar_lea.hbm %s1, %s280
          %s283 = sshll.u32 %s265, 4
          %s284 = int_to_ptr.vmem [resolvable:$true] %s283
          %286 = dma.vmem_to_hbm [thread:$0]  %s284, 32, %s281, %s262
        $region32: #{ramm_forward.2} parent=23 // pred_fallthru
          _
        // Predicated region
        $region33: #{ramm_forward.2} parent=23 // pred_check
          %p287 = pneg %p111
        $region34: #{ramm_forward.2} parent=23 // pred_check_branch
          %289 = sbr.rel (%p287) target = $region36
        $region35: #{ramm_forward.2} parent=23 // pred_region
          %s291 = ssub.s32 256, 256
          %292 = vsyncadd %s267, %s291
          %s293 = smul.addr %s28, 2
          %s294 = smul.addr %s27, 2
          %s295 = sadd.s32 %s293, %s294
          %s296 = smul.addr %s295, 128
          %s297 = scalar_lea.hbm %s2, %s296
          %s298 = sshll.u32 %s270, 4
          %s299 = int_to_ptr.vmem [resolvable:$true] %s298
          %304 = dma.vmem_to_hbm [thread:$0]  %s299, 256, %s297, %s267, 128, 128, 8
        $region36: #{ramm_forward.2} parent=23 // pred_fallthru
          _
      $region24: #{ramm_forward.2} parent=5 // pred_fallthru
        _
      %p305 = scmp.le.s32.totalorder 2, %s18
      // Predicated region
      $region37: #{ramm_forward.2} parent=5 // pred_check
        %p306 = pneg %p305
      $region38: #{ramm_forward.2} parent=5 // pred_check_branch
        %308 = sbr.rel (%p306) target = $region40
      $region39: #{ramm_forward.2} parent=5 // pred_region
        %s309 = ssub.s32 %s18, 2
        // Predicated region
        $region41: #{ramm_forward.2} parent=39 // pred_check
          %p310 = pneg %p89
        $region42: #{ramm_forward.2} parent=39 // pred_check_branch
          %312 = sbr.rel (%p310) target = $region44
        $region43: #{ramm_forward.2} parent=39 // pred_region
          %s313 = sand.u32 %s74, 1
          %s314 = scalar_lea.sflag [#allocation4], %s313
          %s315 = sand.u32 %s74, 1
          %s316 = smul.addr %s315, 2
          %s317 = scalar_lea.vmem [#allocation5], %s316
          %318 = dma.done %s314, 32
        $region44: #{ramm_forward.2} parent=39 // pred_fallthru
          _
        // Predicated region
        $region45: #{ramm_forward.2} parent=39 // pred_check
          %p319 = pneg %p117
        $region46: #{ramm_forward.2} parent=39 // pred_check_branch
          %321 = sbr.rel (%p319) target = $region48
        $region47: #{ramm_forward.2} parent=39 // pred_region
          %s322 = sand.u32 %s102, 1
          %s323 = scalar_lea.sflag [#allocation7], %s322
          %s324 = sand.u32 %s102, 1
          %s325 = smul.addr %s324, 16
          %s326 = scalar_lea.vmem [#allocation6], %s325
          %327 = dma.done %s323, 256
        $region48: #{ramm_forward.2} parent=39 // pred_fallthru
          _
      $region40: #{ramm_forward.2} parent=5 // pred_fallthru
        _
    $region6: #{ramm_forward.2} parent=1 // loop_footer
      %s22 = sadd.s32 1, %s18
    $region7: #{ramm_forward.2} parent=1 // loop_footer_branch
      %17 = sbr.rel target = $region3
    $region8: #{ramm_forward.2} parent=1 // loop_exit
      _
    %328 = vsyncpa [#allocation3], 1
    %s329 = scalar_lea.sflag [#allocation3], 1
    %330 = vsyncpa %s329, 1
    %331 = vsyncpa [#allocation4], 1
    %s332 = scalar_lea.sflag [#allocation4], 1
    %333 = vsyncpa %s332, 1
    %334 = vsyncpa [#allocation7], 1
    %s335 = scalar_lea.sflag [#allocation7], 1
    %336 = vsyncpa %s335, 1

// kernel: ramm_forward.3
$region0: #{ramm_forward.3}
  #allocation0 [shape = 'u32[]', space=smem, size = 0x4, offset = 0x4, fixed_abs, tag = 'smem constant byte address 0x4 - core index']
  #allocation1 [shape = 'u32[144,128]{1,0:T(1,128)}', space=vmem, size = 0x12000, scoped, tag = 'internal scratch']
  %s0 = inlined_call_operand.hbm [shape: f32[2,16,256], index: 0, kind: input, shape index: {}]
  %s1 = inlined_call_operand.hbm [shape: f32[2,16,1], index: 1, kind: input, shape index: {}]
  %s2 = inlined_call_operand.hbm [shape: f32[2,1,256], index: 2, kind: input, shape index: {}]
  %s3 = inlined_call_operand.hbm [shape: f32[2,16,256], index: 3, kind: output, shape index: {}]
  %s4 = sld [smem:[#allocation0]]
  $region57: #{ramm_forward.3} parent=0
    _
  %s6 = ssub.s32 1, %s4
  %s7 = scalar_select 0, %s6, %s4
  $region1: #{ramm_forward.3} parent=0
    #allocation2 [shape = 'u8[32768]{0}', space=vmem, size = 0x8000, scoped, tag = 'input window, operand 0']
    #allocation3 [shape = 's32[2]{0}', space=sflag, size = 0x8, scoped, tag = 'scoped memory for ramm_forward.3']
    #allocation4 [shape = 's32[2]{0}', space=sflag, size = 0x8, scoped, tag = 'scoped memory for ramm_forward.3']
    #allocation5 [shape = 'u8[16384]{0}', space=vmem, size = 0x4000, scoped, tag = 'input window, operand 1']
    #allocation6 [shape = 's32[2]{0}', space=sflag, size = 0x8, scoped, tag = 'scoped memory for ramm_forward.3']
    #allocation7 [shape = 'u8[2048]{0}', space=vmem, size = 0x800, scoped, tag = 'input window, operand 2']
    #allocation8 [shape = 'u8[32768]{0}', space=vmem, size = 0x8000, scoped, tag = 'output window, operand 0']
    %8 = vsyncpa [#allocation3], 0
    %s9 = scalar_lea.sflag [#allocation3], 1
    %10 = vsyncpa %s9, 0
    %11 = vsyncpa [#allocation6], 0
    %s12 = scalar_lea.sflag [#allocation6], 1
    %13 = vsyncpa %s12, 0
    %14 = vsyncpa [#allocation4], 0
    %s15 = scalar_lea.sflag [#allocation4], 1
    %16 = vsyncpa %s15, 0
    loop: start=0, step=1, limit=4
    $region2: #{ramm_forward.3} parent=1 // loop_pre_header
      _
    $region3: #{ramm_forward.3} parent=1 // loop_header
      %s18 = sphi 0, %s22
      %p19 = scmp.ge.s32.totalorder %s18, 4
      %s25 = sphi 0, %s37
      %s26 = sphi 0, %s33
      %s27 = sphi 0, %s25
      %s28 = sphi 0, %s26
      %s29 = sphi 0, %s27
      %s30 = sphi 0, %s28
      %s42 = sphi 0, %s44
      %s45 = sphi 0, %s42
      %s46 = sphi 0, %s45
      %s62 = sphi 0, %s46
      %s68 = sphi 0, %s70
      %s71 = sphi 0, %s68
      %s72 = sphi 0, %s71
      %s88 = sphi 0, %s72
      %s96 = sphi 0, %s98
      %s99 = sphi 0, %s96
      %s100 = sphi 0, %s99
      %s116 = sphi 0, %s100
      %s124 = sphi 0, %s126
      %s127 = sphi 0, %s124
      %s128 = sphi 0, %s127
      %s144 = sphi 0, %s128
    $region4: #{ramm_forward.3} parent=1 // loop_header_branch
      %21 = sbr.rel (%p19) target = $region8
    $region5: #{ramm_forward.3} parent=1 // loop_body
      %s23 = ssub.s32 %s18, 1
      %s24 = ssub.s32 %s18, 2
      %s31 = sadd.s32 1, %s26
      %p32 = scmp.ge.s32.totalorder %s31, 1
      %s33 = scalar_select %p32, 0, %s31
      %s34 = sadd.s32 1, %s25
      %s35 = scalar_select %p32, %s34, %s25
      %p36 = scmp.ge.s32.totalorder %s35, 2
      %s37 = scalar_select %p36, 0, %s35
      %s38 = ssub.s32 %s25, %s37
      %s39 = ssub.s32 %s26, %s33
      %s40 = sor.u32 %s38, %s39
      %p41 = scmp.eq.s32.totalorder %s40, 0
      %s43 = sadd.s32 %s42, 1
      %s44 = scalar_select %p41, %s42, %s43
      %p47 = pneg %p41
      %p48 = scmp.eq.s32.totalorder %s18, 1
      %p49 = por %p47, %p48
      %p50 = scmp.ne.s32.totalorder %s42, %s45
      %p51 = scmp.eq.s32.totalorder %s18, 0
      %p52 = por %p50, %p51
      %p53 = scmp.ne.s32.totalorder %s42, %s45
      %p54 = scmp.eq.s32.totalorder %s23, 1
      %p55 = por %p53, %p54
      %p56 = scmp.ne.s32.totalorder %s45, %s46
      %p57 = scmp.eq.s32.totalorder %s23, 0
      %p58 = por %p56, %p57
      %p59 = scmp.ne.s32.totalorder %s45, %s46
      %p60 = scmp.eq.s32.totalorder %s24, 1
      %p61 = por %p59, %p60
      %p63 = scmp.ne.s32.totalorder %s46, %s62
      %p64 = scmp.eq.s32.totalorder %s24, 0
      %p65 = por %p63, %p64
      %s66 = ssub.s32 %s25, %s37
      %p67 = scmp.eq.s32.totalorder %s66, 0
      %s69 = sadd.s32 %s68, 1
      %s70 = scalar_select %p67, %s68, %s69
      %p73 = pneg %p67
      %p74 = scmp.eq.s32.totalorder %s18, 1
      %p75 = por %p73, %p74
      %p76 = scmp.ne.s32.totalorder %s68, %s71
      %p77 = scmp.eq.s32.totalorder %s18, 0
      %p78 = por %p76, %p77
      %p79 = scmp.ne.s32.totalorder %s68, %s71
      %p80 = scmp.eq.s32.totalorder %s23, 1
      %p81 = por %p79, %p80
      %p82 = scmp.ne.s32.totalorder %s71, %s72
      %p83 = scmp.eq.s32.totalorder %s23, 0
      %p84 = por %p82, %p83
      %p85 = scmp.ne.s32.totalorder %s71, %s72
      %p86 = scmp.eq.s32.totalorder %s24, 1
      %p87 = por %p85, %p86
      %p89 = scmp.ne.s32.totalorder %s72, %s88
      %p90 = scmp.eq.s32.totalorder %s24, 0
      %p91 = por %p89, %p90
      %s92 = ssub.s32 %s25, %s37
      %s93 = ssub.s32 %s26, %s33
      %s94 = sor.u32 %s92, %s93
      %p95 = scmp.eq.s32.totalorder %s94, 0
      %s97 = sadd.s32 %s96, 1
      %s98 = scalar_select %p95, %s96, %s97
      %p101 = pneg %p95
      %p102 = scmp.eq.s32.totalorder %s18, 1
      %p103 = por %p101, %p102
      %p104 = scmp.ne.s32.totalorder %s96, %s99
      %p105 = scmp.eq.s32.totalorder %s18, 0
      %p106 = por %p104, %p105
      %p107 = scmp.ne.s32.totalorder %s96, %s99
      %p108 = scmp.eq.s32.totalorder %s23, 1
      %p109 = por %p107, %p108
      %p110 = scmp.ne.s32.totalorder %s99, %s100
      %p111 = scmp.eq.s32.totalorder %s23, 0
      %p112 = por %p110, %p111
      %p113 = scmp.ne.s32.totalorder %s99, %s100
      %p114 = scmp.eq.s32.totalorder %s24, 1
      %p115 = por %p113, %p114
      %p117 = scmp.ne.s32.totalorder %s100, %s116
      %p118 = scmp.eq.s32.totalorder %s24, 0
      %p119 = por %p117, %p118
      %s120 = ssub.s32 %s25, %s37
      %s121 = ssub.s32 %s26, %s33
      %s122 = sor.u32 %s120, %s121
      %p123 = scmp.eq.s32.totalorder %s122, 0
      %s125 = sadd.s32 %s124, 1
      %s126 = scalar_select %p123, %s124, %s125
      %p129 = pneg %p123
      %p130 = scmp.eq.s32.totalorder %s18, 1
      %p131 = por %p129, %p130
      %p132 = scmp.ne.s32.totalorder %s124, %s127
      %p133 = scmp.eq.s32.totalorder %s18, 0
      %p134 = por %p132, %p133
      %p135 = scmp.ne.s32.totalorder %s124, %s127
      %p136 = scmp.eq.s32.totalorder %s23, 1
      %p137 = por %p135, %p136
      %p138 = scmp.ne.s32.totalorder %s127, %s128
      %p139 = scmp.eq.s32.totalorder %s23, 0
      %p140 = por %p138, %p139
      %p141 = scmp.ne.s32.totalorder %s127, %s128
      %p142 = scmp.eq.s32.totalorder %s24, 1
      %p143 = por %p141, %p142
      %p145 = scmp.ne.s32.totalorder %s128, %s144
      %p146 = scmp.eq.s32.totalorder %s24, 0
      %p147 = por %p145, %p146
      %p148 = scmp.le.s32.totalorder 1, %s18
      %p149 = scmp.lt.s32.totalorder %s18, 3
      %p150 = pnand %p148, %p149
      %p151 = pneg %p150
      // Predicated region
      $region9: #{ramm_forward.3} parent=5 // pred_check
        _
      $region10: #{ramm_forward.3} parent=5 // pred_check_branch
        %153 = sbr.rel (%p150) target = $region12
      $region11: #{ramm_forward.3} parent=5 // pred_region
        %s154 = ssub.s32 %s18, 1
      $region12: #{ramm_forward.3} parent=5 // pred_fallthru
        _
      %p155 = scmp.lt.s32.totalorder %s18, 2
      // Predicated region
      $region13: #{ramm_forward.3} parent=5 // pred_check
        %p156 = pneg %p155
      $region14: #{ramm_forward.3} parent=5 // pred_check_branch
        %158 = sbr.rel (%p156) target = $region16
      $region15: #{ramm_forward.3} parent=5 // pred_region
        // Predicated region
        $region17: #{ramm_forward.3} parent=15 // pred_check
          %p159 = pneg %p52
        $region18: #{ramm_forward.3} parent=15 // pred_check_branch
          %161 = sbr.rel (%p159) target = $region20
        $region19: #{ramm_forward.3} parent=15 // pred_region
          %s162 = sand.u32 %s42, 1
          %s163 = scalar_lea.sflag [#allocation3], %s162
          %s164 = sand.u32 %s42, 1
          %s165 = smul.addr %s164, 32
          %s166 = scalar_lea.vmem [#allocation2], %s165
          %s167 = smul.u32 2, %s26
          %s169 = ssub.s32 512, 512
          %170 = vsyncadd %s163, %s169
          %s171 = smul.addr %s25, 4
          %s172 = sadd.s32 %s167, %s171
          %s173 = smul.addr %s172, 128
          %s174 = scalar_lea.hbm %s0, %s173
          %s175 = sshll.u32 %s166, 4
          %s176 = int_to_ptr.vmem [resolvable:$true] %s175
          %181 = dma.hbm_to_vmem [thread:$0]  %s174, 512, %s176, %s163, 256, 256, 16
        $region20: #{ramm_forward.3} parent=15 // pred_fallthru
          _
        // Predicated region
        $region21: #{ramm_forward.3} parent=15 // pred_check
          %p182 = pneg %p78
        $region22: #{ramm_forward.3} parent=15 // pred_check_branch
          %184 = sbr.rel (%p182) target = $region24
        $region23: #{ramm_forward.3} parent=15 // pred_region
          %s185 = sand.u32 %s18, 1
          %s186 = scalar_lea.sflag [#allocation6], %s185
          %s187 = sand.u32 %s68, 1
          %s188 = smul.addr %s187, 16
          %s189 = scalar_lea.vmem [#allocation5], %s188
          %s191 = ssub.s32 256, 256
          %192 = vsyncadd %s186, %s191
          %s193 = smul.addr %s25, 2
          %s194 = smul.addr %s193, 128
          %s195 = scalar_lea.hbm %s1, %s194
          %s196 = sshll.u32 %s189, 4
          %s197 = int_to_ptr.vmem [resolvable:$true] %s196
          %202 = dma.hbm_to_vmem [thread:$0]  %s195, 256, %s197, %s186, 128, 128, 8
        $region24: #{ramm_forward.3} parent=15 // pred_fallthru
          _
        // Predicated region
        $region25: #{ramm_forward.3} parent=15 // pred_check
          %p203 = pneg %p106
        $region26: #{ramm_forward.3} parent=15 // pred_check_branch
          %205 = sbr.rel (%p203) target = $region28
        $region27: #{ramm_forward.3} parent=15 // pred_region
          %s206 = sand.u32 %s18, 1
          %s207 = scalar_lea.sflag [#allocation6], %s206
          %s208 = sand.u32 %s96, 1
          %s209 = smul.addr %s208, 2
          %s210 = scalar_lea.vmem [#allocation7], %s209
          %s211 = smul.u32 2, %s26
          %s213 = ssub.s32 32, 32
          %214 = vsyncadd %s207, %s213
          %s215 = smul.addr %s25, 2
          %s216 = sadd.s32 %s211, %s215
          %s217 = smul.addr %s216, 16
          %s218 = scalar_lea.hbm %s2, %s217
          %s220 = sshll.u32 %s210, 4
          %s221 = int_to_ptr.vmem [resolvable:$true] %s220
          %223 = dma.hbm_to_vmem [thread:$0]  %s218, 32, %s221, %s207
        $region28: #{ramm_forward.3} parent=15 // pred_fallthru
          _
      $region16: #{ramm_forward.3} parent=5 // pred_fallthru
        _
      %p224 = scmp.le.s32.totalorder 1, %s18
      %p225 = scmp.lt.s32.totalorder %s18, 3
      %p226 = pnand %p224, %p225
      %p227 = pneg %p226
      // Predicated region
      $region29: #{ramm_forward.3} parent=5 // pred_check
        _
      $region30: #{ramm_forward.3} parent=5 // pred_check_branch
        %229 = sbr.rel (%p226) target = $region32
      $region31: #{ramm_forward.3} parent=5 // pred_region
        %s230 = ssub.s32 %s18, 1
        %s231 = sand.u32 %s45, 1
        %s232 = scalar_lea.sflag [#allocation3], %s231
        %s233 = sand.u32 %s45, 1
        %s234 = smul.addr %s233, 32
        %s235 = scalar_lea.vmem [#allocation2], %s234
        // Predicated region
        $region33: #{ramm_forward.3} parent=31 // pred_check
          %p236 = pneg %p58
        $region34: #{ramm_forward.3} parent=31 // pred_check_branch
          %238 = sbr.rel (%p236) target = $region36
        $region35: #{ramm_forward.3} parent=31 // pred_region
          %239 = dma.done %s232, 512
        $region36: #{ramm_forward.3} parent=31 // pred_fallthru
          _
        %s240 = sand.u32 %s23, 1
        %s241 = scalar_lea.sflag [#allocation6], %s240
        %s242 = sand.u32 %s71, 1
        %s243 = smul.addr %s242, 16
        %s244 = scalar_lea.vmem [#allocation5], %s243
        // Predicated region
        $region37: #{ramm_forward.3} parent=31 // pred_check
          %p245 = pneg %p84
        $region38: #{ramm_forward.3} parent=31 // pred_check_branch
          %247 = sbr.rel (%p245) target = $region40
        $region39: #{ramm_forward.3} parent=31 // pred_region
          %248 = dma.done %s241, 256
        $region40: #{ramm_forward.3} parent=31 // pred_fallthru
          _
        %s249 = sand.u32 %s23, 1
        %s250 = scalar_lea.sflag [#allocation6], %s249
        %s251 = sand.u32 %s99, 1
        %s252 = smul.addr %s251, 2
        %s253 = scalar_lea.vmem [#allocation7], %s252
        // Predicated region
        $region41: #{ramm_forward.3} parent=31 // pred_check
          %p254 = pneg %p112
        $region42: #{ramm_forward.3} parent=31 // pred_check_branch
          %256 = sbr.rel (%p254) target = $region44
        $region43: #{ramm_forward.3} parent=31 // pred_region
          %257 = dma.done %s250, 32
        $region44: #{ramm_forward.3} parent=31 // pred_fallthru
          _
        %s258 = sand.u32 %s45, 1
        %s259 = scalar_lea.sflag [#allocation3], %s258
        %s260 = sand.u32 %s45, 1
        %s261 = smul.addr %s260, 32
        %s262 = scalar_lea.vmem [#allocation2], %s261
        %p263 = pneg %p58
        %p264 = pneg %p55
        %s265 = sand.u32 %s23, 1
        %s266 = scalar_lea.sflag [#allocation6], %s265
        %s267 = sand.u32 %s71, 1
        %s268 = smul.addr %s267, 16
        %s269 = scalar_lea.vmem [#allocation5], %s268
        %p270 = pneg %p84
        %p271 = pneg %p81
        %s272 = sand.u32 %s23, 1
        %s273 = scalar_lea.sflag [#allocation6], %s272
        %s274 = sand.u32 %s99, 1
        %s275 = smul.addr %s274, 2
        %s276 = scalar_lea.vmem [#allocation7], %s275
        %p277 = pneg %p112
        %p278 = pneg %p109
        %p279 = pneg %p140
        %p280 = pneg %p137
        %s281 = sand.u32 %s127, 1
        %s282 = scalar_lea.sflag [#allocation4], %s281
        %s283 = sand.u32 %s127, 1
        %s284 = smul.addr %s283, 32
        %s285 = scalar_lea.vmem [#allocation8], %s284
        %s286 = smul.u32 2, %s28
        %s287 = smul.u32 2, %s28
        %s288 = smul.u32 2, %s28
        %v289 = vld [vmem:[%s244] sm:$0xff]
        %v290 = vld [vmem:[%s244 + $0x8] sm:$0xff]
        %v291 = vld [vmem:[%s253] sm:$0x3]
        %293 = vset.pattern.permute.xlu0 0
        %294 = vperm.xlu0 %293, %v289
        %v295 = vpop.permute.xlu0 %294
        %298 = vset.pattern.permute.xlu0 0
        %299 = vperm.xlu0 %298, %v290
        %v300 = vpop.permute.xlu0 %299
        %v303 = vlaneseq
        %v304 = vshrl.u32 %v303, 7
        %v305 = vsub.s32 0, %v304
        %v306 = vrot.slane %v291, %v305
        %v307 = vlaneseq
        %v308 = vshrl.u32 %v307, 7
        %v309 = vsub.s32 1, %v308
        %v310 = vrot.slane %v291, %v309
        %v313 = vadd.f32 %v295, %v306
        %v314 = vadd.f32 %v295, %v310
        %v315 = vadd.f32 %v300, %v306
        %v316 = vadd.f32 %v300, %v310
        %v317 = vmul.f32 %v313, 0.5
        %v318 = vmul.f32 %v314, 0.5
        %v319 = vmul.f32 %v315, 0.5
        %v320 = vmul.f32 %v316, 0.5
        %v321 = vtanh.pop %v317
        %v322 = vtanh.pop %v318
        %v323 = vtanh.pop %v319
        %v324 = vtanh.pop %v320
        %v325 = vadd.f32 %v321, 1.0
        %v326 = vadd.f32 %v322, 1.0
        %v327 = vadd.f32 %v323, 1.0
        %v328 = vadd.f32 %v324, 1.0
        %v329 = vmul.f32 %v325, 0.5
        %v330 = vmul.f32 %v326, 0.5
        %v331 = vmul.f32 %v327, 0.5
        %v332 = vmul.f32 %v328, 0.5
        %v333 = vld [vmem:[%s235] sm:$0xff]
        %v334 = vld [vmem:[%s235 + $0x8] sm:$0xff]
        %v335 = vld [vmem:[%s235 + $0x10] sm:$0xff]
        %v336 = vld [vmem:[%s235 + $0x18] sm:$0xff]
        %v337 = vmul.f32 %v333, %v329
        %v338 = vmul.f32 %v334, %v330
        %v339 = vmul.f32 %v335, %v331
        %v340 = vmul.f32 %v336, %v332
        %341 = vst [vmem:[%s285] sm:$0xff] %v337
        %342 = vst [vmem:[%s285 + $0x8] sm:$0xff] %v338
        %343 = vst [vmem:[%s285 + $0x10] sm:$0xff] %v339
        %344 = vst [vmem:[%s285 + $0x18] sm:$0xff] %v340
        %s345 = sand.u32 %s127, 1
        %s346 = scalar_lea.sflag [#allocation4], %s345
        %s347 = sand.u32 %s127, 1
        %s348 = smul.addr %s347, 32
        %s349 = scalar_lea.vmem [#allocation8], %s348
        // Predicated region
        $region45: #{ramm_forward.3} parent=31 // pred_check
          %p350 = pneg %p137
        $region46: #{ramm_forward.3} parent=31 // pred_check_branch
          %352 = sbr.rel (%p350) target = $region48
        $region47: #{ramm_forward.3} parent=31 // pred_region
          %s353 = smul.u32 2, %s28
          %s355 = ssub.s32 512, 512
          %356 = vsyncadd %s346, %s355
          %s357 = smul.addr %s27, 4
          %s358 = sadd.s32 %s353, %s357
          %s359 = smul.addr %s358, 128
          %s360 = scalar_lea.hbm %s3, %s359
          %s361 = sshll.u32 %s349, 4
          %s362 = int_to_ptr.vmem [resolvable:$true] %s361
          %367 = dma.vmem_to_hbm [thread:$0]  %s362, 512, %s360, %s346, 256, 256, 16
        $region48: #{ramm_forward.3} parent=31 // pred_fallthru
          _
      $region32: #{ramm_forward.3} parent=5 // pred_fallthru
        _
      %p368 = scmp.le.s32.totalorder 2, %s18
      // Predicated region
      $region49: #{ramm_forward.3} parent=5 // pred_check
        %p369 = pneg %p368
      $region50: #{ramm_forward.3} parent=5 // pred_check_branch
        %371 = sbr.rel (%p369) target = $region52
      $region51: #{ramm_forward.3} parent=5 // pred_region
        %s372 = ssub.s32 %s18, 2
        // Predicated region
        $region53: #{ramm_forward.3} parent=51 // pred_check
          %p373 = pneg %p143
        $region54: #{ramm_forward.3} parent=51 // pred_check_branch
          %375 = sbr.rel (%p373) target = $region56
        $region55: #{ramm_forward.3} parent=51 // pred_region
          %s376 = sand.u32 %s128, 1
          %s377 = scalar_lea.sflag [#allocation4], %s376
          %s378 = sand.u32 %s128, 1
          %s379 = smul.addr %s378, 32
          %s380 = scalar_lea.vmem [#allocation8], %s379
          %381 = dma.done %s377, 512
        $region56: #{ramm_forward.3} parent=51 // pred_fallthru
          _
      $region52: #{ramm_forward.3} parent=5 // pred_fallthru
        _
    $region6: #{ramm_forward.3} parent=1 // loop_footer
      %s22 = sadd.s32 1, %s18
    $region7: #{ramm_forward.3} parent=1 // loop_footer_branch
      %17 = sbr.rel target = $region3
    $region8: #{ramm_forward.3} parent=1 // loop_exit
      _
    %382 = vsyncpa [#allocation3], 1
    %s383 = scalar_lea.sflag [#allocation3], 1
    %384 = vsyncpa %s383, 1
    %385 = vsyncpa [#allocation6], 1
    %s386 = scalar_lea.sflag [#allocation6], 1
    %387 = vsyncpa %s386, 1
    %388 = vsyncpa [#allocation4], 1
    %s389 = scalar_lea.sflag [#allocation4], 1
    %390 = vsyncpa %s389, 1

</llo_original>
